<compile_context>
chip_gen: v7x
topology: tpu7x:2x2x1
jax: 0.10.0
libtpu: 0.0.40
codegen_flags: <defaults>
</compile_context>

<pallas_src>
import jax
import jax.numpy as jnp
from jax.experimental import pallas as pl
from jax.experimental.pallas import tpu as pltpu


def _round_up(x, m):
    return ((x + m - 1) // m) * m


def _cdiv(a, b):
    return -(-a // b)


def _block_diag(w, f):
    """(in, out) -> (f*in, f*out): block-diagonal with f copies of w."""
    if f == 1:
        return w
    in_d, out_d = w.shape
    eye = jnp.eye(f, dtype=w.dtype)
    return (eye[:, None, :, None] * w[None, :, None, :]).reshape(f * in_d, f * out_d)


# --------------------------------------------------------------------------- kernel
def _autoencoder_kernel(x_ref,
                        w1_ref, b1_ref, w2_ref, b2_ref, w3_ref, b3_ref,
                        w4_ref, b4_ref, w5_ref, b5_ref, w6_ref, b6_ref,
                        out_ref):
    """Fused encoder+decoder forward for one batch tile.

    Encoder: (Linear, ReLU) x 3.  Decoder: (Linear, ReLU) x 2, Linear.
    Matmuls accumulate in f32 on the MXU; weights/activations may be bf16.
    """
    compute_dtype = w1_ref.dtype
    h = x_ref[...].astype(compute_dtype)

    def linear(h, w_ref, b_ref, relu):
        y = jnp.dot(h, w_ref[...], preferred_element_type=jnp.float32)
        y = y + b_ref[...]               # bias is (1, out) f32 -> broadcasts over rows
        if relu:
            y = jnp.maximum(y, 0.0)
        return y

    h = linear(h, w1_ref, b1_ref, True).astype(compute_dtype)   # encoder L1
    h = linear(h, w2_ref, b2_ref, True).astype(compute_dtype)   # encoder L2
    h = linear(h, w3_ref, b3_ref, True).astype(compute_dtype)   # encoder L3 -> latent
    h = linear(h, w4_ref, b4_ref, True).astype(compute_dtype)   # decoder L1
    h = linear(h, w5_ref, b5_ref, True).astype(compute_dtype)   # decoder L2
    h = linear(h, w6_ref, b6_ref, False)                        # decoder L3 (no act), f32
    out_ref[...] = h.astype(out_ref.dtype)


# --------------------------------------------------------------------- weight prep
def prepare_params(params, *, compute_dtype=jnp.bfloat16):
    """Fold/cast the weights ONCE (hoisted out of the per-call forward path).

    When input_dim divides 128, `fold = 128 // input_dim` logical rows are
    packed into one 128-lane physical row (pure row-major reinterpretation in
    the forward), which makes the streamed x/out blocks lane-dense (unmasked
    vst); the weights become block-diagonal (fold copies) -- mathematically
    identical.  Returns (weight_args, fold, lane_dim).
    """
    input_dim = params["w1"].shape[0]
    if input_dim < 128 and 128 % input_dim == 0:
        fold = 128 // input_dim
    else:
        fold = 1  # TODO(synk): input_dim not dividing 128 keeps <128-lane (masked) stores.
    lane_dim = fold * input_dim

    weight_args = []
    for i in range(1, 7):
        w = _block_diag(params[f"w{i}"].astype(compute_dtype), fold)
        b = jnp.tile(params[f"b{i}"].astype(jnp.float32), (1, fold))
        weight_args += [w, b]
    return tuple(weight_args), fold, lane_dim


# -------------------------------------------------------------------- VMEM budget
_VMEM_LIMIT_CAP = 56 * 1024 * 1024   # stay below v7x's 64 MiB physical VMEM
_VMEM_HEADROOM = 4 * 1024 * 1024     # compiler temporaries / MXU staging
_STREAM_TARGET = 24 * 1024 * 1024    # streamed x/out buffers + live intermediates
_STREAM_BUFFERS = 3                  # pipeline depth for the streamed x / out blocks


def _per_row_vmem_bytes(lane_dim, buffers):
    # streamed x + out blocks (f32, `buffers`-deep) ...
    stream = 2 * buffers * lane_dim * 4
    # ... plus ~4 live f32 per-layer intermediates and their bf16 casts,
    # lane-padded to at least 128 lanes.
    inter = max(128, lane_dim) * (4 * 4 + 4 * 2)
    return stream + inter


# -------------------------------------------------------------------------- forward
def autoencoder_forward(x, prepared):
    """x: (B, input_dim) f32.  prepared: output of prepare_params()."""
    weight_args, fold, lane_dim = prepared
    B, input_dim = x.shape
    out_dtype = jnp.float32
    # TODO(synk): stream x/out as bf16 if the surrounding model tolerates it
    # (halves HBM traffic); kept f32 here to match the nn.Module interface.

    if fold > 1 and B % fold != 0:
        # TODO(synk): fold-misaligned batches still pay one pad pass; a manual-DMA
        # gather of the ragged tail rows would remove it.
        x = jnp.pad(x, ((0, fold - B % fold), (0, 0)))
    b_pad = x.shape[0]
    rows = b_pad // fold
    x2 = x.reshape(rows, lane_dim)             # exact row-major reinterpretation

    # ---- tile selection: divide the real row count as evenly as possible ----
    weight_bytes = 2 * sum(int(a.size) * a.dtype.itemsize for a in weight_args)
    stream_budget = max(1 << 20,
                        min(_STREAM_TARGET,
                            _VMEM_LIMIT_CAP - _VMEM_HEADROOM - weight_bytes))
    per_row = _per_row_vmem_bytes(lane_dim, _STREAM_BUFFERS)
    max_tile = max(8, (stream_budget // per_row) // 8 * 8)
    num_blocks = _cdiv(rows, max_tile)
    tile = min(max_tile, _round_up(_cdiv(rows, num_blocks), 8))
    grid = (int(_cdiv(rows, tile)),)           # last block may be ragged: OOB reads
                                               # hit discarded rows, OOB writes dropped
    vmem_limit = int(min(_VMEM_LIMIT_CAP,
                         tile * per_row + weight_bytes + _VMEM_HEADROOM))

    def _call(stream_kwargs):
        in_specs = [pl.BlockSpec((tile, lane_dim), lambda i: (i, 0), **stream_kwargs)]
        # Constant index_map: weights/biases are fetched once and stay VMEM-resident.
        in_specs += [pl.BlockSpec(a.shape, lambda i: (0, 0)) for a in weight_args]
        out_spec = pl.BlockSpec((tile, lane_dim), lambda i: (i, 0), **stream_kwargs)
        return pl.pallas_call(
            _autoencoder_kernel,
            out_shape=jax.ShapeDtypeStruct((rows, lane_dim), out_dtype),
            grid_spec=pltpu.PrefetchScalarGridSpec(
                num_scalar_prefetch=0,
                grid=grid,
                in_specs=in_specs,
                out_specs=out_spec,
            ),
            compiler_params=pltpu.CompilerParams(
                # Batch axis is fully independent -> shard across TCs on megacore parts.
                # TODO(synk): confirm with xprof that both v7x TCs drive DMA; switch to
                # pltpu.CORE_PARALLEL here if only one core is issuing the streams.
                dimension_semantics=("parallel",),
                vmem_limit_bytes=vmem_limit,
            ),
        )(x2, *weight_args)

    try:
        # 3-deep pipelining on the streamed blocks hides the prefetch/writeback seam.
        out2 = _call(dict(pipeline_mode=pl.Buffered(_STREAM_BUFFERS)))
    except Exception:
        # Deep buffering is a small optimisation; never fail the forward over it.
        out2 = _call({})

    out = out2.reshape(b_pad, input_dim)
    return out if b_pad == B else out[:B]


# ----------------------------------------------------------------------- reference
def init_params(key, input_dim, latent_dim):
    """PyTorch nn.Linear default init: U(-1/sqrt(fan_in), 1/sqrt(fan_in)).
    Weights stored as (in_features, out_features)."""
    hidden = (input_dim + latent_dim) // 2
    layer_dims = [
        (input_dim, hidden),   # encoder L1
        (hidden, hidden),      # encoder L2
        (hidden, latent_dim),  # encoder L3
        (latent_dim, hidden),  # decoder L1
        (hidden, hidden),      # decoder L2
        (hidden, input_dim),   # decoder L3
    ]
    params = {}
    keys = jax.random.split(key, 2 * len(layer_dims))
    for idx, (fan_in, fan_out) in enumerate(layer_dims):
        bound = 1.0 / jnp.sqrt(jnp.float32(fan_in))
        wk, bk = keys[2 * idx], keys[2 * idx + 1]
        params[f"w{idx + 1}"] = jax.random.uniform(
            wk, (fan_in, fan_out), jnp.float32, minval=-bound, maxval=bound)
        params[f"b{idx + 1}"] = jax.random.uniform(
            bk, (1, fan_out), jnp.float32, minval=-bound, maxval=bound)
    return params


def reference_forward(x, params):
    """Plain-JAX f32 reference (same math)."""
    h = x
    for i in range(1, 7):
        h = h @ params[f"w{i}"] + params[f"b{i}"]
        if i != 6:
            h = jnp.maximum(h, 0.0)
    return h


if __name__ == "__main__":
    input_dim = 32
    latent_dim = 8      # hidden = (32 + 8) // 2 = 20
    batch = 256

    key = jax.random.PRNGKey(0)
    pkey, xkey = jax.random.split(key)
    params = init_params(pkey, input_dim, latent_dim)
    x = jax.random.normal(xkey, (batch, input_dim), jnp.float32)

    ref = reference_forward(x, params)

    # Exact-math path (f32 weights/activations) — tight tolerance.
    prep_f32 = prepare_params(params, compute_dtype=jnp.float32)
    out_f32 = jax.block_until_ready(autoencoder_forward(x, prep_f32))
    assert out_f32.shape == (batch, input_dim)
    assert jnp.allclose(out_f32, ref, atol=1e-4, rtol=1e-4), "f32 mismatch vs reference"

    # Default fast path (bf16 weights/activations, f32 MXU accumulation, f32 I/O).
    prep_bf16 = prepare_params(params)
    out_bf16 = jax.block_until_ready(autoencoder_forward(x, prep_bf16))
    assert out_bf16.shape == (batch, input_dim)
    assert jnp.allclose(out_bf16, ref, atol=5e-2, rtol=5e-2), "bf16 mismatch vs reference"

    # Ragged-batch path: fold-aligned but not tile-aligned -> last grid block is
    # partial, with no wrapper pad/slice copies.
    batch_r = 200                     # 200 % fold(4) == 0, rows=50 not multiple of 8
    xr = x[:batch_r]
    out_r = jax.block_until_ready(autoencoder_forward(xr, prep_bf16))
    assert out_r.shape == (batch_r, input_dim)
    assert jnp.allclose(out_r, ref[:batch_r], atol=5e-2, rtol=5e-2), "ragged mismatch"

    print("KERNEL_OK")
</pallas_src>

<mosaic_0001>
module attributes {stable_mosaic.version = 11 : i64} {
  func.func @_autoencoder_kernel(%arg0: i32, %arg1: memref<64x128xf32, #tpu.memory_space<vmem>>, %arg2: memref<128x80xf32, #tpu.memory_space<vmem>>, %arg3: memref<1x80xf32, #tpu.memory_space<vmem>>, %arg4: memref<80x80xf32, #tpu.memory_space<vmem>>, %arg5: memref<1x80xf32, #tpu.memory_space<vmem>>, %arg6: memref<80x32xf32, #tpu.memory_space<vmem>>, %arg7: memref<1x32xf32, #tpu.memory_space<vmem>>, %arg8: memref<32x80xf32, #tpu.memory_space<vmem>>, %arg9: memref<1x80xf32, #tpu.memory_space<vmem>>, %arg10: memref<80x80xf32, #tpu.memory_space<vmem>>, %arg11: memref<1x80xf32, #tpu.memory_space<vmem>>, %arg12: memref<80x128xf32, #tpu.memory_space<vmem>>, %arg13: memref<1x128xf32, #tpu.memory_space<vmem>>, %arg14: memref<64x128xf32, #tpu.memory_space<vmem>>) attributes {dimension_semantics = [#tpu.dimension_semantics<parallel>], iteration_bounds = array<i64: 1>, scalar_prefetch = 0 : i64, scratch_operands = 0 : i64, tpu.core_type = #tpu.core_type<tc>, window_params = [{transform_indices = @transform_0, window_bounds = array<i64: 64, 128>}, {pipeline_mode = #tpu.pipeline_mode<synchronous>, transform_indices = @transform_1, window_bounds = array<i64: 128, 80>}, {pipeline_mode = #tpu.pipeline_mode<synchronous>, transform_indices = @transform_2, window_bounds = array<i64: 1, 80>}, {pipeline_mode = #tpu.pipeline_mode<synchronous>, transform_indices = @transform_3, window_bounds = array<i64: 80, 80>}, {pipeline_mode = #tpu.pipeline_mode<synchronous>, transform_indices = @transform_4, window_bounds = array<i64: 1, 80>}, {pipeline_mode = #tpu.pipeline_mode<synchronous>, transform_indices = @transform_5, window_bounds = array<i64: 80, 32>}, {pipeline_mode = #tpu.pipeline_mode<synchronous>, transform_indices = @transform_6, window_bounds = array<i64: 1, 32>}, {pipeline_mode = #tpu.pipeline_mode<synchronous>, transform_indices = @transform_7, window_bounds = array<i64: 32, 80>}, {pipeline_mode = #tpu.pipeline_mode<synchronous>, transform_indices = @transform_8, window_bounds = array<i64: 1, 80>}, {pipeline_mode = #tpu.pipeline_mode<synchronous>, transform_indices = @transform_9, window_bounds = array<i64: 80, 80>}, {pipeline_mode = #tpu.pipeline_mode<synchronous>, transform_indices = @transform_10, window_bounds = array<i64: 1, 80>}, {pipeline_mode = #tpu.pipeline_mode<synchronous>, transform_indices = @transform_11, window_bounds = array<i64: 80, 128>}, {pipeline_mode = #tpu.pipeline_mode<synchronous>, transform_indices = @transform_12, window_bounds = array<i64: 1, 128>}, {transform_indices = @transform_13, window_bounds = array<i64: 64, 128>}]} {
    %c0 = arith.constant 0 : index
    %c0_0 = arith.constant 0 : index
    %0 = vector.load %arg1[%c0, %c0_0] : memref<64x128xf32, #tpu.memory_space<vmem>>, vector<64x128xf32>
    %c0_1 = arith.constant 0 : index
    %c0_2 = arith.constant 0 : index
    %1 = vector.load %arg2[%c0_1, %c0_2] : memref<128x80xf32, #tpu.memory_space<vmem>>, vector<128x80xf32>
    %cst = arith.constant dense<0.000000e+00> : vector<64x80xf32>
    %2 = tpu.matmul %0, %1, %cst {dimension_numbers = #tpu.dot_dimension_numbers<[1], [0], [0], [1], [0, 0, 1, 1], [], []>} : vector<64x128xf32>, vector<128x80xf32>, vector<64x80xf32> -> vector<64x80xf32>
    %c0_3 = arith.constant 0 : index
    %c0_4 = arith.constant 0 : index
    %3 = vector.load %arg3[%c0_3, %c0_4] : memref<1x80xf32, #tpu.memory_space<vmem>>, vector<1x80xf32>
    %4 = vector.broadcast %3 : vector<1x80xf32> to vector<64x80xf32>
    %5 = arith.addf %2, %4 : vector<64x80xf32>
    %cst_5 = arith.constant 0.000000e+00 : f32
    %6 = vector.broadcast %cst_5 : f32 to vector<64x80xf32>
    %7 = arith.maximumf %5, %6 : vector<64x80xf32>
    %c0_6 = arith.constant 0 : index
    %c0_7 = arith.constant 0 : index
    %8 = vector.load %arg4[%c0_6, %c0_7] : memref<80x80xf32, #tpu.memory_space<vmem>>, vector<80x80xf32>
    %cst_8 = arith.constant dense<0.000000e+00> : vector<64x80xf32>
    %9 = tpu.matmul %7, %8, %cst_8 {dimension_numbers = #tpu.dot_dimension_numbers<[1], [0], [0], [1], [0, 0, 1, 1], [], []>} : vector<64x80xf32>, vector<80x80xf32>, vector<64x80xf32> -> vector<64x80xf32>
    %c0_9 = arith.constant 0 : index
    %c0_10 = arith.constant 0 : index
    %10 = vector.load %arg5[%c0_9, %c0_10] : memref<1x80xf32, #tpu.memory_space<vmem>>, vector<1x80xf32>
    %11 = vector.broadcast %10 : vector<1x80xf32> to vector<64x80xf32>
    %12 = arith.addf %9, %11 : vector<64x80xf32>
    %cst_11 = arith.constant 0.000000e+00 : f32
    %13 = vector.broadcast %cst_11 : f32 to vector<64x80xf32>
    %14 = arith.maximumf %12, %13 : vector<64x80xf32>
    %c0_12 = arith.constant 0 : index
    %c0_13 = arith.constant 0 : index
    %15 = vector.load %arg6[%c0_12, %c0_13] : memref<80x32xf32, #tpu.memory_space<vmem>>, vector<80x32xf32>
    %cst_14 = arith.constant dense<0.000000e+00> : vector<64x32xf32>
    %16 = tpu.matmul %14, %15, %cst_14 {dimension_numbers = #tpu.dot_dimension_numbers<[1], [0], [0], [1], [0, 0, 1, 1], [], []>} : vector<64x80xf32>, vector<80x32xf32>, vector<64x32xf32> -> vector<64x32xf32>
    %c0_15 = arith.constant 0 : index
    %c0_16 = arith.constant 0 : index
    %17 = vector.load %arg7[%c0_15, %c0_16] : memref<1x32xf32, #tpu.memory_space<vmem>>, vector<1x32xf32>
    %18 = vector.broadcast %17 : vector<1x32xf32> to vector<64x32xf32>
    %19 = arith.addf %16, %18 : vector<64x32xf32>
    %cst_17 = arith.constant 0.000000e+00 : f32
    %20 = vector.broadcast %cst_17 : f32 to vector<64x32xf32>
    %21 = arith.maximumf %19, %20 : vector<64x32xf32>
    %c0_18 = arith.constant 0 : index
    %c0_19 = arith.constant 0 : index
    %22 = vector.load %arg8[%c0_18, %c0_19] : memref<32x80xf32, #tpu.memory_space<vmem>>, vector<32x80xf32>
    %cst_20 = arith.constant dense<0.000000e+00> : vector<64x80xf32>
    %23 = tpu.matmul %21, %22, %cst_20 {dimension_numbers = #tpu.dot_dimension_numbers<[1], [0], [0], [1], [0, 0, 1, 1], [], []>} : vector<64x32xf32>, vector<32x80xf32>, vector<64x80xf32> -> vector<64x80xf32>
    %c0_21 = arith.constant 0 : index
    %c0_22 = arith.constant 0 : index
    %24 = vector.load %arg9[%c0_21, %c0_22] : memref<1x80xf32, #tpu.memory_space<vmem>>, vector<1x80xf32>
    %25 = vector.broadcast %24 : vector<1x80xf32> to vector<64x80xf32>
    %26 = arith.addf %23, %25 : vector<64x80xf32>
    %cst_23 = arith.constant 0.000000e+00 : f32
    %27 = vector.broadcast %cst_23 : f32 to vector<64x80xf32>
    %28 = arith.maximumf %26, %27 : vector<64x80xf32>
    %c0_24 = arith.constant 0 : index
    %c0_25 = arith.constant 0 : index
    %29 = vector.load %arg10[%c0_24, %c0_25] : memref<80x80xf32, #tpu.memory_space<vmem>>, vector<80x80xf32>
    %cst_26 = arith.constant dense<0.000000e+00> : vector<64x80xf32>
    %30 = tpu.matmul %28, %29, %cst_26 {dimension_numbers = #tpu.dot_dimension_numbers<[1], [0], [0], [1], [0, 0, 1, 1], [], []>} : vector<64x80xf32>, vector<80x80xf32>, vector<64x80xf32> -> vector<64x80xf32>
    %c0_27 = arith.constant 0 : index
    %c0_28 = arith.constant 0 : index
    %31 = vector.load %arg11[%c0_27, %c0_28] : memref<1x80xf32, #tpu.memory_space<vmem>>, vector<1x80xf32>
    %32 = vector.broadcast %31 : vector<1x80xf32> to vector<64x80xf32>
    %33 = arith.addf %30, %32 : vector<64x80xf32>
    %cst_29 = arith.constant 0.000000e+00 : f32
    %34 = vector.broadcast %cst_29 : f32 to vector<64x80xf32>
    %35 = arith.maximumf %33, %34 : vector<64x80xf32>
    %c0_30 = arith.constant 0 : index
    %c0_31 = arith.constant 0 : index
    %36 = vector.load %arg12[%c0_30, %c0_31] : memref<80x128xf32, #tpu.memory_space<vmem>>, vector<80x128xf32>
    %cst_32 = arith.constant dense<0.000000e+00> : vector<64x128xf32>
    %37 = tpu.matmul %35, %36, %cst_32 {dimension_numbers = #tpu.dot_dimension_numbers<[1], [0], [0], [1], [0, 0, 1, 1], [], []>} : vector<64x80xf32>, vector<80x128xf32>, vector<64x128xf32> -> vector<64x128xf32>
    %c0_33 = arith.constant 0 : index
    %c0_34 = arith.constant 0 : index
    %38 = vector.load %arg13[%c0_33, %c0_34] : memref<1x128xf32, #tpu.memory_space<vmem>>, vector<1x128xf32>
    %39 = vector.broadcast %38 : vector<1x128xf32> to vector<64x128xf32>
    %40 = arith.addf %37, %39 : vector<64x128xf32>
    %c0_35 = arith.constant 0 : index
    %c0_36 = arith.constant 0 : index
    %41 = vector.load %arg14[%c0_35, %c0_36] : memref<64x128xf32, #tpu.memory_space<vmem>>, vector<64x128xf32>
    tpu.vector_store %arg14[%c0_35, %c0_36], %40 {strides = array<i32>} : memref<64x128xf32, #tpu.memory_space<vmem>>, vector<64x128xf32>,
    return
  }
  func.func @transform_0(%arg0: i32) -> (i32, i32) {
    %c0_i32 = arith.constant 0 : i32
    %c0_i32_0 = arith.constant 0 : i32
    return %arg0, %c0_i32 : i32, i32
  }
  func.func @transform_1(%arg0: i32) -> (i32, i32) {
    %c0_i32 = arith.constant 0 : i32
    %c0_i32_0 = arith.constant 0 : i32
    %c0_i32_1 = arith.constant 0 : i32
    return %c0_i32, %c0_i32_0 : i32, i32
  }
  func.func @transform_2(%arg0: i32) -> (i32, i32) {
    %c0_i32 = arith.constant 0 : i32
    %c0_i32_0 = arith.constant 0 : i32
    %c0_i32_1 = arith.constant 0 : i32
    return %c0_i32, %c0_i32_0 : i32, i32
  }
  func.func @transform_3(%arg0: i32) -> (i32, i32) {
    %c0_i32 = arith.constant 0 : i32
    %c0_i32_0 = arith.constant 0 : i32
    %c0_i32_1 = arith.constant 0 : i32
    return %c0_i32, %c0_i32_0 : i32, i32
  }
  func.func @transform_4(%arg0: i32) -> (i32, i32) {
    %c0_i32 = arith.constant 0 : i32
    %c0_i32_0 = arith.constant 0 : i32
    %c0_i32_1 = arith.constant 0 : i32
    return %c0_i32, %c0_i32_0 : i32, i32
  }
  func.func @transform_5(%arg0: i32) -> (i32, i32) {
    %c0_i32 = arith.constant 0 : i32
    %c0_i32_0 = arith.constant 0 : i32
    %c0_i32_1 = arith.constant 0 : i32
    return %c0_i32, %c0_i32_0 : i32, i32
  }
  func.func @transform_6(%arg0: i32) -> (i32, i32) {
    %c0_i32 = arith.constant 0 : i32
    %c0_i32_0 = arith.constant 0 : i32
    %c0_i32_1 = arith.constant 0 : i32
    return %c0_i32, %c0_i32_0 : i32, i32
  }
  func.func @transform_7(%arg0: i32) -> (i32, i32) {
    %c0_i32 = arith.constant 0 : i32
    %c0_i32_0 = arith.constant 0 : i32
    %c0_i32_1 = arith.constant 0 : i32
    return %c0_i32, %c0_i32_0 : i32, i32
  }
  func.func @transform_8(%arg0: i32) -> (i32, i32) {
    %c0_i32 = arith.constant 0 : i32
    %c0_i32_0 = arith.constant 0 : i32
    %c0_i32_1 = arith.constant 0 : i32
    return %c0_i32, %c0_i32_0 : i32, i32
  }
  func.func @transform_9(%arg0: i32) -> (i32, i32) {
    %c0_i32 = arith.constant 0 : i32
    %c0_i32_0 = arith.constant 0 : i32
    %c0_i32_1 = arith.constant 0 : i32
    return %c0_i32, %c0_i32_0 : i32, i32
  }
  func.func @transform_10(%arg0: i32) -> (i32, i32) {
    %c0_i32 = arith.constant 0 : i32
    %c0_i32_0 = arith.constant 0 : i32
    %c0_i32_1 = arith.constant 0 : i32
    return %c0_i32, %c0_i32_0 : i32, i32
  }
  func.func @transform_11(%arg0: i32) -> (i32, i32) {
    %c0_i32 = arith.constant 0 : i32
    %c0_i32_0 = arith.constant 0 : i32
    %c0_i32_1 = arith.constant 0 : i32
    return %c0_i32, %c0_i32_0 : i32, i32
  }
  func.func @transform_12(%arg0: i32) -> (i32, i32) {
    %c0_i32 = arith.constant 0 : i32
    %c0_i32_0 = arith.constant 0 : i32
    %c0_i32_1 = arith.constant 0 : i32
    return %c0_i32, %c0_i32_0 : i32, i32
  }
  func.func @transform_13(%arg0: i32) -> (i32, i32) {
    %c0_i32 = arith.constant 0 : i32
    %c0_i32_0 = arith.constant 0 : i32
    return %arg0, %c0_i32 : i32, i32
  }
}

</mosaic_0001>

<llo_original>
// kernel: tpu_custom_call.1
$region0: #{tpu_custom_call.1}
  #allocation0 [shape = 'u32[]', space=smem, size = 0x4, offset = 0x4, fixed_abs, tag = 'smem constant byte address 0x4 - core index']
  #allocation1 [shape = 'u32[144,128]{1,0:T(1,128)}', space=vmem, size = 0x12000, scoped, tag = 'internal scratch']
  %s0 = inlined_call_operand.hbm [shape: f32[64,128], index: 0, kind: input, shape index: {}]
  %s1 = inlined_call_operand.vmem [shape: f32[128,80], index: 1, kind: input, shape index: {}]
  %s2 = inlined_call_operand.vmem [shape: f32[1,80], index: 2, kind: input, shape index: {}]
  %s3 = inlined_call_operand.vmem [shape: f32[80,80], index: 3, kind: input, shape index: {}]
  %s4 = inlined_call_operand.vmem [shape: f32[1,80], index: 4, kind: input, shape index: {}]
  %s5 = inlined_call_operand.vmem [shape: f32[80,32], index: 5, kind: input, shape index: {}]
  %s6 = inlined_call_operand.vmem [shape: f32[1,32], index: 6, kind: input, shape index: {}]
  %s7 = inlined_call_operand.hbm [shape: f32[32,80], index: 7, kind: input, shape index: {}]
  %s8 = inlined_call_operand.vmem [shape: f32[1,80], index: 8, kind: input, shape index: {}]
  %s9 = inlined_call_operand.vmem [shape: f32[80,80], index: 9, kind: input, shape index: {}]
  %s10 = inlined_call_operand.vmem [shape: f32[1,80], index: 10, kind: input, shape index: {}]
  %s11 = inlined_call_operand.vmem [shape: f32[80,128], index: 11, kind: input, shape index: {}]
  %s12 = inlined_call_operand.vmem [shape: f32[1,128], index: 12, kind: input, shape index: {}]
  %s13 = inlined_call_operand.hbm [shape: f32[64,128], index: 13, kind: output, shape index: {}]
  %s14 = sld [smem:[#allocation0]]
  $region70: #{tpu_custom_call.1} parent=0
    _
  %s16 = ssub.s32 1, %s14
  %s17 = scalar_select 0, %s16, %s14
  $region1: #{tpu_custom_call.1} parent=0
    #allocation2 [shape = 'u8[32768]{0}', space=vmem, size = 0x8000, scoped, tag = 'input window, operand 0, single buffered']
    #allocation3 [shape = 's32[1]{0}', space=sflag, size = 0x4, scoped, tag = 'scoped memory for tpu_custom_call.1']
    #allocation4 [shape = 's32[1]{0}', space=sflag, size = 0x4, scoped, tag = 'scoped memory for tpu_custom_call.1']
    #allocation5 [shape = 'u8[16384]{0}', space=vmem, size = 0x4000, scoped, tag = 'input window, operand 7, single buffered']
    #allocation6 [shape = 's32[1]{0}', space=sflag, size = 0x4, scoped, tag = 'scoped memory for tpu_custom_call.1']
    #allocation7 [shape = 'u8[32768]{0}', space=vmem, size = 0x8000, scoped, tag = 'output window, operand 0, single buffered']
    %18 = vsyncpa [#allocation3], 0
    %19 = vsyncpa [#allocation6], 0
    %20 = vsyncpa [#allocation4], 0
    // Predicated region
    $region2: #{tpu_custom_call.1} parent=1 // pred_check
      _
    $region3: #{tpu_custom_call.1} parent=1 // pred_check_branch
      %22 = sbr.rel (0) target = $region5
    $region4: #{tpu_custom_call.1} parent=1 // pred_region
      %s24 = ssub.s32 1024, 1024
      %25 = vsyncadd [#allocation3], %s24
      %s26 = sshll.u32 [#allocation2], 4
      %s27 = int_to_ptr.vmem [resolvable:$true] %s26
      %32 = dma.hbm_to_vmem [thread:$0]  %s0, 1024, %s27, [#allocation3], 128, 128, 8
    $region5: #{tpu_custom_call.1} parent=1 // pred_fallthru
      _
    // Predicated region
    $region6: #{tpu_custom_call.1} parent=1 // pred_check
      _
    $region7: #{tpu_custom_call.1} parent=1 // pred_check_branch
      %34 = sbr.rel (0) target = $region9
    $region8: #{tpu_custom_call.1} parent=1 // pred_region
      _
    $region9: #{tpu_custom_call.1} parent=1 // pred_fallthru
      _
    // Predicated region
    $region10: #{tpu_custom_call.1} parent=1 // pred_check
      _
    $region11: #{tpu_custom_call.1} parent=1 // pred_check_branch
      %36 = sbr.rel (0) target = $region13
    $region12: #{tpu_custom_call.1} parent=1 // pred_region
      _
    $region13: #{tpu_custom_call.1} parent=1 // pred_fallthru
      _
    // Predicated region
    $region14: #{tpu_custom_call.1} parent=1 // pred_check
      _
    $region15: #{tpu_custom_call.1} parent=1 // pred_check_branch
      %38 = sbr.rel (0) target = $region17
    $region16: #{tpu_custom_call.1} parent=1 // pred_region
      _
    $region17: #{tpu_custom_call.1} parent=1 // pred_fallthru
      _
    // Predicated region
    $region18: #{tpu_custom_call.1} parent=1 // pred_check
      _
    $region19: #{tpu_custom_call.1} parent=1 // pred_check_branch
      %40 = sbr.rel (0) target = $region21
    $region20: #{tpu_custom_call.1} parent=1 // pred_region
      _
    $region21: #{tpu_custom_call.1} parent=1 // pred_fallthru
      _
    // Predicated region
    $region22: #{tpu_custom_call.1} parent=1 // pred_check
      _
    $region23: #{tpu_custom_call.1} parent=1 // pred_check_branch
      %42 = sbr.rel (0) target = $region25
    $region24: #{tpu_custom_call.1} parent=1 // pred_region
      _
    $region25: #{tpu_custom_call.1} parent=1 // pred_fallthru
      _
    // Predicated region
    $region26: #{tpu_custom_call.1} parent=1 // pred_check
      _
    $region27: #{tpu_custom_call.1} parent=1 // pred_check_branch
      %44 = sbr.rel (0) target = $region29
    $region28: #{tpu_custom_call.1} parent=1 // pred_region
      _
    $region29: #{tpu_custom_call.1} parent=1 // pred_fallthru
      _
    // Predicated region
    $region30: #{tpu_custom_call.1} parent=1 // pred_check
      _
    $region31: #{tpu_custom_call.1} parent=1 // pred_check_branch
      %46 = sbr.rel (0) target = $region33
    $region32: #{tpu_custom_call.1} parent=1 // pred_region
      %s48 = ssub.s32 512, 512
      %49 = vsyncadd [#allocation6], %s48
      %s50 = sshll.u32 [#allocation5], 4
      %s51 = int_to_ptr.vmem [resolvable:$true] %s50
      %56 = dma.hbm_to_vmem [thread:$0]  %s7, 512, %s51, [#allocation6], 128, 128, 8
    $region33: #{tpu_custom_call.1} parent=1 // pred_fallthru
      _
    // Predicated region
    $region34: #{tpu_custom_call.1} parent=1 // pred_check
      _
    $region35: #{tpu_custom_call.1} parent=1 // pred_check_branch
      %58 = sbr.rel (0) target = $region37
    $region36: #{tpu_custom_call.1} parent=1 // pred_region
      _
    $region37: #{tpu_custom_call.1} parent=1 // pred_fallthru
      _
    // Predicated region
    $region38: #{tpu_custom_call.1} parent=1 // pred_check
      _
    $region39: #{tpu_custom_call.1} parent=1 // pred_check_branch
      %60 = sbr.rel (0) target = $region41
    $region40: #{tpu_custom_call.1} parent=1 // pred_region
      _
    $region41: #{tpu_custom_call.1} parent=1 // pred_fallthru
      _
    // Predicated region
    $region42: #{tpu_custom_call.1} parent=1 // pred_check
      _
    $region43: #{tpu_custom_call.1} parent=1 // pred_check_branch
      %62 = sbr.rel (0) target = $region45
    $region44: #{tpu_custom_call.1} parent=1 // pred_region
      _
    $region45: #{tpu_custom_call.1} parent=1 // pred_fallthru
      _
    // Predicated region
    $region46: #{tpu_custom_call.1} parent=1 // pred_check
      _
    $region47: #{tpu_custom_call.1} parent=1 // pred_check_branch
      %64 = sbr.rel (0) target = $region49
    $region48: #{tpu_custom_call.1} parent=1 // pred_region
      _
    $region49: #{tpu_custom_call.1} parent=1 // pred_fallthru
      _
    // Predicated region
    $region50: #{tpu_custom_call.1} parent=1 // pred_check
      _
    $region51: #{tpu_custom_call.1} parent=1 // pred_check_branch
      %66 = sbr.rel (0) target = $region53
    $region52: #{tpu_custom_call.1} parent=1 // pred_region
      _
    $region53: #{tpu_custom_call.1} parent=1 // pred_fallthru
      _
    // Predicated region
    $region54: #{tpu_custom_call.1} parent=1 // pred_check
      _
    $region55: #{tpu_custom_call.1} parent=1 // pred_check_branch
      %68 = sbr.rel (0) target = $region57
    $region56: #{tpu_custom_call.1} parent=1 // pred_region
      %69 = dma.done [#allocation3], 1024
    $region57: #{tpu_custom_call.1} parent=1 // pred_fallthru
      _
    // Predicated region
    $region58: #{tpu_custom_call.1} parent=1 // pred_check
      _
    $region59: #{tpu_custom_call.1} parent=1 // pred_check_branch
      %71 = sbr.rel (0) target = $region61
    $region60: #{tpu_custom_call.1} parent=1 // pred_region
      %72 = dma.done [#allocation6], 512
    $region61: #{tpu_custom_call.1} parent=1 // pred_fallthru
      _
    %v73 = vld [vmem:[#allocation2] sm:$0xff]
    %v74 = vld [vmem:[#allocation2 + $0x8] sm:$0xff]
    %v75 = vld [vmem:[#allocation2 + $0x10] sm:$0xff]
    %v76 = vld [vmem:[#allocation2 + $0x18] sm:$0xff]
    %v77 = vld [vmem:[#allocation2 + $0x20] sm:$0xff]
    %v78 = vld [vmem:[#allocation2 + $0x28] sm:$0xff]
    %v79 = vld [vmem:[#allocation2 + $0x30] sm:$0xff]
    %v80 = vld [vmem:[#allocation2 + $0x38] sm:$0xff]
    %v81 = vld [vmem:[%s1] sm:$0xff]
    %v82 = vld [vmem:[%s1 + $0x8] sm:$0xff]
    %v83 = vld [vmem:[%s1 + $0x10] sm:$0xff]
    %v84 = vld [vmem:[%s1 + $0x18] sm:$0xff]
    %v85 = vld [vmem:[%s1 + $0x20] sm:$0xff]
    %v86 = vld [vmem:[%s1 + $0x28] sm:$0xff]
    %v87 = vld [vmem:[%s1 + $0x30] sm:$0xff]
    %v88 = vld [vmem:[%s1 + $0x38] sm:$0xff]
    %v89 = vld [vmem:[%s1 + $0x40] sm:$0xff]
    %v90 = vld [vmem:[%s1 + $0x48] sm:$0xff]
    %v91 = vld [vmem:[%s1 + $0x50] sm:$0xff]
    %v92 = vld [vmem:[%s1 + $0x58] sm:$0xff]
    %v93 = vld [vmem:[%s1 + $0x60] sm:$0xff]
    %v94 = vld [vmem:[%s1 + $0x68] sm:$0xff]
    %v95 = vld [vmem:[%s1 + $0x70] sm:$0xff]
    %v96 = vld [vmem:[%s1 + $0x78] sm:$0xff]
    %v97 = vld [vmem:[%s2] sm:$0x1]
    %v99 = vlaneseq
    %v100 = vshrl.u32 %v99, 7
    %v101 = vsub.s32 0, %v100
    %v102 = vrot.slane %v97, %v101
    %104 = vmatprep.subr.mxu0 0.0
    %105 = vmatpush1.msra.mxu0 %v81
    %106 = vmatprep.subr.mxu0 0.0
    %107 = vmatpush1.msra.mxu0 %v82
    %108 = vmatprep.subr.mxu0 0.0
    %109 = vmatpush1.msra.mxu0 %v83
    %110 = vmatprep.subr.mxu0 0.0
    %111 = vmatpush1.msra.mxu0 %v84
    %112 = vmatprep.subr.mxu0 0.0
    %113 = vmatpush1.msra.mxu0 %v85
    %114 = vmatprep.subr.mxu0 0.0
    %115 = vmatpush1.msra.mxu0 %v86
    %116 = vmatprep.subr.mxu0 0.0
    %117 = vmatpush1.msra.mxu0 %v87
    %118 = vmatprep.subr.mxu0 0.0
    %119 = vmatpush1.msra.mxu0 %v88
    %120 = vmatprep.subr.mxu0 0.0
    %121 = vmatpush1.msra.mxu0 %v89
    %122 = vmatprep.subr.mxu0 0.0
    %123 = vmatpush1.msra.mxu0 %v90
    %124 = vmatprep.subr.mxu0 0.0
    %125 = vmatpush1.msra.mxu0 %v91
    %126 = vmatprep.subr.mxu0 0.0
    %127 = vmatpush1.msra.mxu0 %v92
    %128 = vmatprep.subr.mxu0 0.0
    %129 = vmatpush1.msra.mxu0 %v93
    %130 = vmatprep.subr.mxu0 0.0
    %131 = vmatpush1.msra.mxu0 %v94
    %132 = vmatprep.subr.mxu0 0.0
    %133 = vmatpush1.msra.mxu0 %v95
    %134 = vmatprep.subr.mxu0 0.0
    %135 = vmatpush1.msra.mxu0 %v96
    %136 = vmatprep.subr.mxu0 0.0
    %137 = vmatpush1.msra.mxu0 0.0
    %138 = vmatprep.subr.mxu0 0.0
    %139 = vmatpush1.msra.mxu0 0.0
    %140 = vmatprep.subr.mxu0 0.0
    %141 = vmatpush1.msra.mxu0 0.0
    %142 = vmatprep.subr.mxu0 0.0
    %143 = vmatpush1.msra.mxu0 0.0
    %144 = vmatprep.subr.mxu0 0.0
    %145 = vmatpush1.msra.mxu0 0.0
    %146 = vmatprep.subr.mxu0 0.0
    %147 = vmatpush1.msra.mxu0 0.0
    %148 = vmatprep.subr.mxu0 0.0
    %149 = vmatpush1.msra.mxu0 0.0
    %150 = vmatprep.subr.mxu0 0.0
    %151 = vmatpush1.msra.mxu0 0.0
    %152 = vmatprep.subr.mxu0 0.0
    %153 = vmatpush1.msra.mxu0 0.0
    %154 = vmatprep.subr.mxu0 0.0
    %155 = vmatpush1.msra.mxu0 0.0
    %156 = vmatprep.subr.mxu0 0.0
    %157 = vmatpush1.msra.mxu0 0.0
    %158 = vmatprep.subr.mxu0 0.0
    %159 = vmatpush1.msra.mxu0 0.0
    %160 = vmatprep.subr.mxu0 0.0
    %161 = vmatpush1.msra.mxu0 0.0
    %162 = vmatprep.subr.mxu0 0.0
    %163 = vmatpush1.msra.mxu0 0.0
    %164 = vmatprep.subr.mxu0 0.0
    %165 = vmatpush1.msra.mxu0 0.0
    %166 = vmatprep.subr.mxu0 0.0
    %167 = vmatpush1.msra.mxu0 0.0
    %168 = vmatprep.mubr.f32.mxu0 0.0
    %169 = vmatmul.mubr.f32.gmra.mrb[0].mxu0 %v73
    %v170 = vpop.f32.mrb[0].mxu0
    %v171 = vadd.f32 %v102, %v170
    %v172 = vpop.f32.mrb[0].mxu0
    %173 = vmatprep.mubr.f32.mxu0 0.0
    %174 = vmatmul.mubr.f32.gmra.mrb[0].mxu0 %v74
    %v175 = vpop.f32.mrb[0].mxu0
    %v176 = vadd.f32 %v102, %v175
    %v177 = vpop.f32.mrb[0].mxu0
    %178 = vmatprep.mubr.f32.mxu0 0.0
    %179 = vmatmul.mubr.f32.gmra.mrb[0].mxu0 %v75
    %v180 = vpop.f32.mrb[0].mxu0
    %v181 = vadd.f32 %v102, %v180
    %v182 = vpop.f32.mrb[0].mxu0
    %183 = vmatprep.mubr.f32.mxu0 0.0
    %184 = vmatmul.mubr.f32.gmra.mrb[0].mxu0 %v76
    %v185 = vpop.f32.mrb[0].mxu0
    %v186 = vadd.f32 %v102, %v185
    %v187 = vpop.f32.mrb[0].mxu0
    %188 = vmatprep.mubr.f32.mxu0 0.0
    %189 = vmatmul.mubr.f32.gmra.mrb[0].mxu0 %v77
    %v190 = vpop.f32.mrb[0].mxu0
    %v191 = vadd.f32 %v102, %v190
    %v192 = vpop.f32.mrb[0].mxu0
    %193 = vmatprep.mubr.f32.mxu0 0.0
    %194 = vmatmul.mubr.f32.gmra.mrb[0].mxu0 %v78
    %v195 = vpop.f32.mrb[0].mxu0
    %v196 = vadd.f32 %v102, %v195
    %v197 = vpop.f32.mrb[0].mxu0
    %198 = vmatprep.mubr.f32.mxu0 0.0
    %199 = vmatmul.mubr.f32.gmra.mrb[0].mxu0 %v79
    %v200 = vpop.f32.mrb[0].mxu0
    %v201 = vadd.f32 %v102, %v200
    %v202 = vpop.f32.mrb[0].mxu0
    %203 = vmatprep.mubr.f32.mxu0 0.0
    %204 = vmatmul.mubr.f32.gmra.mrb[0].mxu0 %v80
    %v205 = vpop.f32.mrb[0].mxu0
    %v206 = vadd.f32 %v102, %v205
    %v207 = vpop.f32.mrb[0].mxu0
    %208 = vdwg.mxu0
    %v209 = vmax.f32 %v171, 0.0
    %v210 = vmax.f32 %v176, 0.0
    %v211 = vmax.f32 %v181, 0.0
    %v212 = vmax.f32 %v186, 0.0
    %v213 = vmax.f32 %v191, 0.0
    %v214 = vmax.f32 %v196, 0.0
    %v215 = vmax.f32 %v201, 0.0
    %v216 = vmax.f32 %v206, 0.0
    %v217 = vld [vmem:[%s3] sm:$0xff]
    %v218 = vld [vmem:[%s3 + $0x8] sm:$0xff]
    %v219 = vld [vmem:[%s3 + $0x10] sm:$0xff]
    %v220 = vld [vmem:[%s3 + $0x18] sm:$0xff]
    %v221 = vld [vmem:[%s3 + $0x20] sm:$0xff]
    %v222 = vld [vmem:[%s3 + $0x28] sm:$0xff]
    %v223 = vld [vmem:[%s3 + $0x30] sm:$0xff]
    %v224 = vld [vmem:[%s3 + $0x38] sm:$0xff]
    %v225 = vld [vmem:[%s3 + $0x40] sm:$0xff]
    %v226 = vld [vmem:[%s3 + $0x48] sm:$0xff]
    %v227 = vld [vmem:[%s4] sm:$0x1]
    %v229 = vlaneseq
    %v230 = vshrl.u32 %v229, 7
    %v231 = vsub.s32 0, %v230
    %v232 = vrot.slane %v227, %v231
    %vm234 = vcmask 654336
    %v236 = vsel %vm234, %v209, 0
    %v239 = vsel %vm234, %v210, 0
    %v242 = vsel %vm234, %v211, 0
    %v245 = vsel %vm234, %v212, 0
    %v248 = vsel %vm234, %v213, 0
    %v251 = vsel %vm234, %v214, 0
    %v254 = vsel %vm234, %v215, 0
    %v257 = vsel %vm234, %v216, 0
    %259 = vmatprep.subr.mxu0 0.0
    %260 = vmatpush1.msra.mxu0 %v217
    %261 = vmatprep.subr.mxu0 0.0
    %262 = vmatpush1.msra.mxu0 %v218
    %263 = vmatprep.subr.mxu0 0.0
    %264 = vmatpush1.msra.mxu0 %v219
    %265 = vmatprep.subr.mxu0 0.0
    %266 = vmatpush1.msra.mxu0 %v220
    %267 = vmatprep.subr.mxu0 0.0
    %268 = vmatpush1.msra.mxu0 %v221
    %269 = vmatprep.subr.mxu0 0.0
    %270 = vmatpush1.msra.mxu0 %v222
    %271 = vmatprep.subr.mxu0 0.0
    %272 = vmatpush1.msra.mxu0 %v223
    %273 = vmatprep.subr.mxu0 0.0
    %274 = vmatpush1.msra.mxu0 %v224
    %275 = vmatprep.subr.mxu0 0.0
    %276 = vmatpush1.msra.mxu0 %v225
    %277 = vmatprep.subr.mxu0 0.0
    %278 = vmatpush1.msra.mxu0 %v226
    %279 = vmatprep.subr.mxu0 0.0
    %280 = vmatpush1.msra.mxu0 0.0
    %281 = vmatprep.subr.mxu0 0.0
    %282 = vmatpush1.msra.mxu0 0.0
    %283 = vmatprep.subr.mxu0 0.0
    %284 = vmatpush1.msra.mxu0 0.0
    %285 = vmatprep.subr.mxu0 0.0
    %286 = vmatpush1.msra.mxu0 0.0
    %287 = vmatprep.subr.mxu0 0.0
    %288 = vmatpush1.msra.mxu0 0.0
    %289 = vmatprep.subr.mxu0 0.0
    %290 = vmatpush1.msra.mxu0 0.0
    %291 = vmatprep.subr.mxu0 0.0
    %292 = vmatpush1.msra.mxu0 0.0
    %293 = vmatprep.subr.mxu0 0.0
    %294 = vmatpush1.msra.mxu0 0.0
    %295 = vmatprep.subr.mxu0 0.0
    %296 = vmatpush1.msra.mxu0 0.0
    %297 = vmatprep.subr.mxu0 0.0
    %298 = vmatpush1.msra.mxu0 0.0
    %299 = vmatprep.subr.mxu0 0.0
    %300 = vmatpush1.msra.mxu0 0.0
    %301 = vmatprep.subr.mxu0 0.0
    %302 = vmatpush1.msra.mxu0 0.0
    %303 = vmatprep.subr.mxu0 0.0
    %304 = vmatpush1.msra.mxu0 0.0
    %305 = vmatprep.subr.mxu0 0.0
    %306 = vmatpush1.msra.mxu0 0.0
    %307 = vmatprep.subr.mxu0 0.0
    %308 = vmatpush1.msra.mxu0 0.0
    %309 = vmatprep.subr.mxu0 0.0
    %310 = vmatpush1.msra.mxu0 0.0
    %311 = vmatprep.subr.mxu0 0.0
    %312 = vmatpush1.msra.mxu0 0.0
    %313 = vmatprep.subr.mxu0 0.0
    %314 = vmatpush1.msra.mxu0 0.0
    %315 = vmatprep.subr.mxu0 0.0
    %316 = vmatpush1.msra.mxu0 0.0
    %317 = vmatprep.subr.mxu0 0.0
    %318 = vmatpush1.msra.mxu0 0.0
    %319 = vmatprep.subr.mxu0 0.0
    %320 = vmatpush1.msra.mxu0 0.0
    %321 = vmatprep.subr.mxu0 0.0
    %322 = vmatpush1.msra.mxu0 0.0
    %323 = vmatprep.mubr.f32.mxu0 0.0
    %324 = vmatmul.mubr.f32.gmra.mrb[0].mxu0 %v236
    %v325 = vpop.f32.mrb[0].mxu0
    %v326 = vadd.f32 %v232, %v325
    %v327 = vpop.f32.mrb[0].mxu0
    %328 = vmatprep.mubr.f32.mxu0 0.0
    %329 = vmatmul.mubr.f32.gmra.mrb[0].mxu0 %v239
    %v330 = vpop.f32.mrb[0].mxu0
    %v331 = vadd.f32 %v232, %v330
    %v332 = vpop.f32.mrb[0].mxu0
    %333 = vmatprep.mubr.f32.mxu0 0.0
    %334 = vmatmul.mubr.f32.gmra.mrb[0].mxu0 %v242
    %v335 = vpop.f32.mrb[0].mxu0
    %v336 = vadd.f32 %v232, %v335
    %v337 = vpop.f32.mrb[0].mxu0
    %338 = vmatprep.mubr.f32.mxu0 0.0
    %339 = vmatmul.mubr.f32.gmra.mrb[0].mxu0 %v245
    %v340 = vpop.f32.mrb[0].mxu0
    %v341 = vadd.f32 %v232, %v340
    %v342 = vpop.f32.mrb[0].mxu0
    %343 = vmatprep.mubr.f32.mxu0 0.0
    %344 = vmatmul.mubr.f32.gmra.mrb[0].mxu0 %v248
    %v345 = vpop.f32.mrb[0].mxu0
    %v346 = vadd.f32 %v232, %v345
    %v347 = vpop.f32.mrb[0].mxu0
    %348 = vmatprep.mubr.f32.mxu0 0.0
    %349 = vmatmul.mubr.f32.gmra.mrb[0].mxu0 %v251
    %v350 = vpop.f32.mrb[0].mxu0
    %v351 = vadd.f32 %v232, %v350
    %v352 = vpop.f32.mrb[0].mxu0
    %353 = vmatprep.mubr.f32.mxu0 0.0
    %354 = vmatmul.mubr.f32.gmra.mrb[0].mxu0 %v254
    %v355 = vpop.f32.mrb[0].mxu0
    %v356 = vadd.f32 %v232, %v355
    %v357 = vpop.f32.mrb[0].mxu0
    %358 = vmatprep.mubr.f32.mxu0 0.0
    %359 = vmatmul.mubr.f32.gmra.mrb[0].mxu0 %v257
    %v360 = vpop.f32.mrb[0].mxu0
    %v361 = vadd.f32 %v232, %v360
    %v362 = vpop.f32.mrb[0].mxu0
    %363 = vdwg.mxu0
    %v364 = vmax.f32 %v326, 0.0
    %v365 = vmax.f32 %v331, 0.0
    %v366 = vmax.f32 %v336, 0.0
    %v367 = vmax.f32 %v341, 0.0
    %v368 = vmax.f32 %v346, 0.0
    %v369 = vmax.f32 %v351, 0.0
    %v370 = vmax.f32 %v356, 0.0
    %v371 = vmax.f32 %v361, 0.0
    %v372 = vld [vmem:[%s5] sm:$0xff]
    %v373 = vld [vmem:[%s5 + $0x8] sm:$0xff]
    %v374 = vld [vmem:[%s5 + $0x10] sm:$0xff]
    %v375 = vld [vmem:[%s5 + $0x18] sm:$0xff]
    %v376 = vld [vmem:[%s5 + $0x20] sm:$0xff]
    %v377 = vld [vmem:[%s5 + $0x28] sm:$0xff]
    %v378 = vld [vmem:[%s5 + $0x30] sm:$0xff]
    %v379 = vld [vmem:[%s5 + $0x38] sm:$0xff]
    %v380 = vld [vmem:[%s5 + $0x40] sm:$0xff]
    %v381 = vld [vmem:[%s5 + $0x48] sm:$0xff]
    %v382 = vld [vmem:[%s6] sm:$0x1]
    %v384 = vlaneseq
    %v385 = vshrl.u32 %v384, 7
    %v386 = vsub.s32 0, %v385
    %v387 = vrot.slane %v382, %v386
    %v390 = vsel %vm234, %v364, 0
    %v393 = vsel %vm234, %v365, 0
    %v396 = vsel %vm234, %v366, 0
    %v399 = vsel %vm234, %v367, 0
    %v402 = vsel %vm234, %v368, 0
    %v405 = vsel %vm234, %v369, 0
    %v408 = vsel %vm234, %v370, 0
    %v411 = vsel %vm234, %v371, 0
    %413 = vmatprep.subr.mxu0 0.0
    %414 = vmatpush1.msra.mxu0 %v372
    %415 = vmatprep.subr.mxu0 0.0
    %416 = vmatpush1.msra.mxu0 %v373
    %417 = vmatprep.subr.mxu0 0.0
    %418 = vmatpush1.msra.mxu0 %v374
    %419 = vmatprep.subr.mxu0 0.0
    %420 = vmatpush1.msra.mxu0 %v375
    %421 = vmatprep.subr.mxu0 0.0
    %422 = vmatpush1.msra.mxu0 %v376
    %423 = vmatprep.subr.mxu0 0.0
    %424 = vmatpush1.msra.mxu0 %v377
    %425 = vmatprep.subr.mxu0 0.0
    %426 = vmatpush1.msra.mxu0 %v378
    %427 = vmatprep.subr.mxu0 0.0
    %428 = vmatpush1.msra.mxu0 %v379
    %429 = vmatprep.subr.mxu0 0.0
    %430 = vmatpush1.msra.mxu0 %v380
    %431 = vmatprep.subr.mxu0 0.0
    %432 = vmatpush1.msra.mxu0 %v381
    %433 = vmatprep.subr.mxu0 0.0
    %434 = vmatpush1.msra.mxu0 0.0
    %435 = vmatprep.subr.mxu0 0.0
    %436 = vmatpush1.msra.mxu0 0.0
    %437 = vmatprep.subr.mxu0 0.0
    %438 = vmatpush1.msra.mxu0 0.0
    %439 = vmatprep.subr.mxu0 0.0
    %440 = vmatpush1.msra.mxu0 0.0
    %441 = vmatprep.subr.mxu0 0.0
    %442 = vmatpush1.msra.mxu0 0.0
    %443 = vmatprep.subr.mxu0 0.0
    %444 = vmatpush1.msra.mxu0 0.0
    %445 = vmatprep.subr.mxu0 0.0
    %446 = vmatpush1.msra.mxu0 0.0
    %447 = vmatprep.subr.mxu0 0.0
    %448 = vmatpush1.msra.mxu0 0.0
    %449 = vmatprep.subr.mxu0 0.0
    %450 = vmatpush1.msra.mxu0 0.0
    %451 = vmatprep.subr.mxu0 0.0
    %452 = vmatpush1.msra.mxu0 0.0
    %453 = vmatprep.subr.mxu0 0.0
    %454 = vmatpush1.msra.mxu0 0.0
    %455 = vmatprep.subr.mxu0 0.0
    %456 = vmatpush1.msra.mxu0 0.0
    %457 = vmatprep.subr.mxu0 0.0
    %458 = vmatpush1.msra.mxu0 0.0
    %459 = vmatprep.subr.mxu0 0.0
    %460 = vmatpush1.msra.mxu0 0.0
    %461 = vmatprep.subr.mxu0 0.0
    %462 = vmatpush1.msra.mxu0 0.0
    %463 = vmatprep.subr.mxu0 0.0
    %464 = vmatpush1.msra.mxu0 0.0
    %465 = vmatprep.subr.mxu0 0.0
    %466 = vmatpush1.msra.mxu0 0.0
    %467 = vmatprep.subr.mxu0 0.0
    %468 = vmatpush1.msra.mxu0 0.0
    %469 = vmatprep.subr.mxu0 0.0
    %470 = vmatpush1.msra.mxu0 0.0
    %471 = vmatprep.subr.mxu0 0.0
    %472 = vmatpush1.msra.mxu0 0.0
    %473 = vmatprep.subr.mxu0 0.0
    %474 = vmatpush1.msra.mxu0 0.0
    %475 = vmatprep.subr.mxu0 0.0
    %476 = vmatpush1.msra.mxu0 0.0
    %477 = vmatprep.mubr.f32.mxu0 0.0
    %478 = vmatmul.mubr.f32.gmra.mrb[0].mxu0 %v390
    %v479 = vpop.f32.mrb[0].mxu0
    %v480 = vadd.f32 %v387, %v479
    %v481 = vpop.f32.mrb[0].mxu0
    %482 = vmatprep.mubr.f32.mxu0 0.0
    %483 = vmatmul.mubr.f32.gmra.mrb[0].mxu0 %v393
    %v484 = vpop.f32.mrb[0].mxu0
    %v485 = vadd.f32 %v387, %v484
    %v486 = vpop.f32.mrb[0].mxu0
    %487 = vmatprep.mubr.f32.mxu0 0.0
    %488 = vmatmul.mubr.f32.gmra.mrb[0].mxu0 %v396
    %v489 = vpop.f32.mrb[0].mxu0
    %v490 = vadd.f32 %v387, %v489
    %v491 = vpop.f32.mrb[0].mxu0
    %492 = vmatprep.mubr.f32.mxu0 0.0
    %493 = vmatmul.mubr.f32.gmra.mrb[0].mxu0 %v399
    %v494 = vpop.f32.mrb[0].mxu0
    %v495 = vadd.f32 %v387, %v494
    %v496 = vpop.f32.mrb[0].mxu0
    %497 = vmatprep.mubr.f32.mxu0 0.0
    %498 = vmatmul.mubr.f32.gmra.mrb[0].mxu0 %v402
    %v499 = vpop.f32.mrb[0].mxu0
    %v500 = vadd.f32 %v387, %v499
    %v501 = vpop.f32.mrb[0].mxu0
    %502 = vmatprep.mubr.f32.mxu0 0.0
    %503 = vmatmul.mubr.f32.gmra.mrb[0].mxu0 %v405
    %v504 = vpop.f32.mrb[0].mxu0
    %v505 = vadd.f32 %v387, %v504
    %v506 = vpop.f32.mrb[0].mxu0
    %507 = vmatprep.mubr.f32.mxu0 0.0
    %508 = vmatmul.mubr.f32.gmra.mrb[0].mxu0 %v408
    %v509 = vpop.f32.mrb[0].mxu0
    %v510 = vadd.f32 %v387, %v509
    %v511 = vpop.f32.mrb[0].mxu0
    %512 = vmatprep.mubr.f32.mxu0 0.0
    %513 = vmatmul.mubr.f32.gmra.mrb[0].mxu0 %v411
    %v514 = vpop.f32.mrb[0].mxu0
    %v515 = vadd.f32 %v387, %v514
    %v516 = vpop.f32.mrb[0].mxu0
    %517 = vdwg.mxu0
    %v518 = vmax.f32 %v480, 0.0
    %v519 = vmax.f32 %v485, 0.0
    %v520 = vmax.f32 %v490, 0.0
    %v521 = vmax.f32 %v495, 0.0
    %v522 = vmax.f32 %v500, 0.0
    %v523 = vmax.f32 %v505, 0.0
    %v524 = vmax.f32 %v510, 0.0
    %v525 = vmax.f32 %v515, 0.0
    %v526 = vld [vmem:[#allocation5] sm:$0xff]
    %v527 = vld [vmem:[#allocation5 + $0x8] sm:$0xff]
    %v528 = vld [vmem:[#allocation5 + $0x10] sm:$0xff]
    %v529 = vld [vmem:[#allocation5 + $0x18] sm:$0xff]
    %v530 = vld [vmem:[%s8] sm:$0x1]
    %v532 = vlaneseq
    %v533 = vshrl.u32 %v532, 7
    %v534 = vsub.s32 0, %v533
    %v535 = vrot.slane %v530, %v534
    %vm537 = vcmask 261120
    %v539 = vsel %vm537, %v518, 0
    %v542 = vsel %vm537, %v519, 0
    %v545 = vsel %vm537, %v520, 0
    %v548 = vsel %vm537, %v521, 0
    %v551 = vsel %vm537, %v522, 0
    %v554 = vsel %vm537, %v523, 0
    %v557 = vsel %vm537, %v524, 0
    %v560 = vsel %vm537, %v525, 0
    %562 = vmatprep.subr.mxu0 0.0
    %563 = vmatpush1.msra.mxu0 %v526
    %564 = vmatprep.subr.mxu0 0.0
    %565 = vmatpush1.msra.mxu0 %v527
    %566 = vmatprep.subr.mxu0 0.0
    %567 = vmatpush1.msra.mxu0 %v528
    %568 = vmatprep.subr.mxu0 0.0
    %569 = vmatpush1.msra.mxu0 %v529
    %570 = vmatprep.subr.mxu0 0.0
    %571 = vmatpush1.msra.mxu0 0.0
    %572 = vmatprep.subr.mxu0 0.0
    %573 = vmatpush1.msra.mxu0 0.0
    %574 = vmatprep.subr.mxu0 0.0
    %575 = vmatpush1.msra.mxu0 0.0
    %576 = vmatprep.subr.mxu0 0.0
    %577 = vmatpush1.msra.mxu0 0.0
    %578 = vmatprep.subr.mxu0 0.0
    %579 = vmatpush1.msra.mxu0 0.0
    %580 = vmatprep.subr.mxu0 0.0
    %581 = vmatpush1.msra.mxu0 0.0
    %582 = vmatprep.subr.mxu0 0.0
    %583 = vmatpush1.msra.mxu0 0.0
    %584 = vmatprep.subr.mxu0 0.0
    %585 = vmatpush1.msra.mxu0 0.0
    %586 = vmatprep.subr.mxu0 0.0
    %587 = vmatpush1.msra.mxu0 0.0
    %588 = vmatprep.subr.mxu0 0.0
    %589 = vmatpush1.msra.mxu0 0.0
    %590 = vmatprep.subr.mxu0 0.0
    %591 = vmatpush1.msra.mxu0 0.0
    %592 = vmatprep.subr.mxu0 0.0
    %593 = vmatpush1.msra.mxu0 0.0
    %594 = vmatprep.subr.mxu0 0.0
    %595 = vmatpush1.msra.mxu0 0.0
    %596 = vmatprep.subr.mxu0 0.0
    %597 = vmatpush1.msra.mxu0 0.0
    %598 = vmatprep.subr.mxu0 0.0
    %599 = vmatpush1.msra.mxu0 0.0
    %600 = vmatprep.subr.mxu0 0.0
    %601 = vmatpush1.msra.mxu0 0.0
    %602 = vmatprep.subr.mxu0 0.0
    %603 = vmatpush1.msra.mxu0 0.0
    %604 = vmatprep.subr.mxu0 0.0
    %605 = vmatpush1.msra.mxu0 0.0
    %606 = vmatprep.subr.mxu0 0.0
    %607 = vmatpush1.msra.mxu0 0.0
    %608 = vmatprep.subr.mxu0 0.0
    %609 = vmatpush1.msra.mxu0 0.0
    %610 = vmatprep.subr.mxu0 0.0
    %611 = vmatpush1.msra.mxu0 0.0
    %612 = vmatprep.subr.mxu0 0.0
    %613 = vmatpush1.msra.mxu0 0.0
    %614 = vmatprep.subr.mxu0 0.0
    %615 = vmatpush1.msra.mxu0 0.0
    %616 = vmatprep.subr.mxu0 0.0
    %617 = vmatpush1.msra.mxu0 0.0
    %618 = vmatprep.subr.mxu0 0.0
    %619 = vmatpush1.msra.mxu0 0.0
    %620 = vmatprep.subr.mxu0 0.0
    %621 = vmatpush1.msra.mxu0 0.0
    %622 = vmatprep.subr.mxu0 0.0
    %623 = vmatpush1.msra.mxu0 0.0
    %624 = vmatprep.subr.mxu0 0.0
    %625 = vmatpush1.msra.mxu0 0.0
    %626 = vmatprep.mubr.f32.mxu0 0.0
    %627 = vmatmul.mubr.f32.gmra.mrb[0].mxu0 %v539
    %v628 = vpop.f32.mrb[0].mxu0
    %v629 = vadd.f32 %v535, %v628
    %v630 = vpop.f32.mrb[0].mxu0
    %631 = vmatprep.mubr.f32.mxu0 0.0
    %632 = vmatmul.mubr.f32.gmra.mrb[0].mxu0 %v542
    %v633 = vpop.f32.mrb[0].mxu0
    %v634 = vadd.f32 %v535, %v633
    %v635 = vpop.f32.mrb[0].mxu0
    %636 = vmatprep.mubr.f32.mxu0 0.0
    %637 = vmatmul.mubr.f32.gmra.mrb[0].mxu0 %v545
    %v638 = vpop.f32.mrb[0].mxu0
    %v639 = vadd.f32 %v535, %v638
    %v640 = vpop.f32.mrb[0].mxu0
    %641 = vmatprep.mubr.f32.mxu0 0.0
    %642 = vmatmul.mubr.f32.gmra.mrb[0].mxu0 %v548
    %v643 = vpop.f32.mrb[0].mxu0
    %v644 = vadd.f32 %v535, %v643
    %v645 = vpop.f32.mrb[0].mxu0
    %646 = vmatprep.mubr.f32.mxu0 0.0
    %647 = vmatmul.mubr.f32.gmra.mrb[0].mxu0 %v551
    %v648 = vpop.f32.mrb[0].mxu0
    %v649 = vadd.f32 %v535, %v648
    %v650 = vpop.f32.mrb[0].mxu0
    %651 = vmatprep.mubr.f32.mxu0 0.0
    %652 = vmatmul.mubr.f32.gmra.mrb[0].mxu0 %v554
    %v653 = vpop.f32.mrb[0].mxu0
    %v654 = vadd.f32 %v535, %v653
    %v655 = vpop.f32.mrb[0].mxu0
    %656 = vmatprep.mubr.f32.mxu0 0.0
    %657 = vmatmul.mubr.f32.gmra.mrb[0].mxu0 %v557
    %v658 = vpop.f32.mrb[0].mxu0
    %v659 = vadd.f32 %v535, %v658
    %v660 = vpop.f32.mrb[0].mxu0
    %661 = vmatprep.mubr.f32.mxu0 0.0
    %662 = vmatmul.mubr.f32.gmra.mrb[0].mxu0 %v560
    %v663 = vpop.f32.mrb[0].mxu0
    %v664 = vadd.f32 %v535, %v663
    %v665 = vpop.f32.mrb[0].mxu0
    %666 = vdwg.mxu0
    %v667 = vmax.f32 %v629, 0.0
    %v668 = vmax.f32 %v634, 0.0
    %v669 = vmax.f32 %v639, 0.0
    %v670 = vmax.f32 %v644, 0.0
    %v671 = vmax.f32 %v649, 0.0
    %v672 = vmax.f32 %v654, 0.0
    %v673 = vmax.f32 %v659, 0.0
    %v674 = vmax.f32 %v664, 0.0
    %v675 = vld [vmem:[%s9] sm:$0xff]
    %v676 = vld [vmem:[%s9 + $0x8] sm:$0xff]
    %v677 = vld [vmem:[%s9 + $0x10] sm:$0xff]
    %v678 = vld [vmem:[%s9 + $0x18] sm:$0xff]
    %v679 = vld [vmem:[%s9 + $0x20] sm:$0xff]
    %v680 = vld [vmem:[%s9 + $0x28] sm:$0xff]
    %v681 = vld [vmem:[%s9 + $0x30] sm:$0xff]
    %v682 = vld [vmem:[%s9 + $0x38] sm:$0xff]
    %v683 = vld [vmem:[%s9 + $0x40] sm:$0xff]
    %v684 = vld [vmem:[%s9 + $0x48] sm:$0xff]
    %v685 = vld [vmem:[%s10] sm:$0x1]
    %v687 = vlaneseq
    %v688 = vshrl.u32 %v687, 7
    %v689 = vsub.s32 0, %v688
    %v690 = vrot.slane %v685, %v689
    %v693 = vsel %vm234, %v667, 0
    %v696 = vsel %vm234, %v668, 0
    %v699 = vsel %vm234, %v669, 0
    %v702 = vsel %vm234, %v670, 0
    %v705 = vsel %vm234, %v671, 0
    %v708 = vsel %vm234, %v672, 0
    %v711 = vsel %vm234, %v673, 0
    %v714 = vsel %vm234, %v674, 0
    %716 = vmatprep.subr.mxu0 0.0
    %717 = vmatpush1.msra.mxu0 %v675
    %718 = vmatprep.subr.mxu0 0.0
    %719 = vmatpush1.msra.mxu0 %v676
    %720 = vmatprep.subr.mxu0 0.0
    %721 = vmatpush1.msra.mxu0 %v677
    %722 = vmatprep.subr.mxu0 0.0
    %723 = vmatpush1.msra.mxu0 %v678
    %724 = vmatprep.subr.mxu0 0.0
    %725 = vmatpush1.msra.mxu0 %v679
    %726 = vmatprep.subr.mxu0 0.0
    %727 = vmatpush1.msra.mxu0 %v680
    %728 = vmatprep.subr.mxu0 0.0
    %729 = vmatpush1.msra.mxu0 %v681
    %730 = vmatprep.subr.mxu0 0.0
    %731 = vmatpush1.msra.mxu0 %v682
    %732 = vmatprep.subr.mxu0 0.0
    %733 = vmatpush1.msra.mxu0 %v683
    %734 = vmatprep.subr.mxu0 0.0
    %735 = vmatpush1.msra.mxu0 %v684
    %736 = vmatprep.subr.mxu0 0.0
    %737 = vmatpush1.msra.mxu0 0.0
    %738 = vmatprep.subr.mxu0 0.0
    %739 = vmatpush1.msra.mxu0 0.0
    %740 = vmatprep.subr.mxu0 0.0
    %741 = vmatpush1.msra.mxu0 0.0
    %742 = vmatprep.subr.mxu0 0.0
    %743 = vmatpush1.msra.mxu0 0.0
    %744 = vmatprep.subr.mxu0 0.0
    %745 = vmatpush1.msra.mxu0 0.0
    %746 = vmatprep.subr.mxu0 0.0
    %747 = vmatpush1.msra.mxu0 0.0
    %748 = vmatprep.subr.mxu0 0.0
    %749 = vmatpush1.msra.mxu0 0.0
    %750 = vmatprep.subr.mxu0 0.0
    %751 = vmatpush1.msra.mxu0 0.0
    %752 = vmatprep.subr.mxu0 0.0
    %753 = vmatpush1.msra.mxu0 0.0
    %754 = vmatprep.subr.mxu0 0.0
    %755 = vmatpush1.msra.mxu0 0.0
    %756 = vmatprep.subr.mxu0 0.0
    %757 = vmatpush1.msra.mxu0 0.0
    %758 = vmatprep.subr.mxu0 0.0
    %759 = vmatpush1.msra.mxu0 0.0
    %760 = vmatprep.subr.mxu0 0.0
    %761 = vmatpush1.msra.mxu0 0.0
    %762 = vmatprep.subr.mxu0 0.0
    %763 = vmatpush1.msra.mxu0 0.0
    %764 = vmatprep.subr.mxu0 0.0
    %765 = vmatpush1.msra.mxu0 0.0
    %766 = vmatprep.subr.mxu0 0.0
    %767 = vmatpush1.msra.mxu0 0.0
    %768 = vmatprep.subr.mxu0 0.0
    %769 = vmatpush1.msra.mxu0 0.0
    %770 = vmatprep.subr.mxu0 0.0
    %771 = vmatpush1.msra.mxu0 0.0
    %772 = vmatprep.subr.mxu0 0.0
    %773 = vmatpush1.msra.mxu0 0.0
    %774 = vmatprep.subr.mxu0 0.0
    %775 = vmatpush1.msra.mxu0 0.0
    %776 = vmatprep.subr.mxu0 0.0
    %777 = vmatpush1.msra.mxu0 0.0
    %778 = vmatprep.subr.mxu0 0.0
    %779 = vmatpush1.msra.mxu0 0.0
    %780 = vmatprep.mubr.f32.mxu0 0.0
    %781 = vmatmul.mubr.f32.gmra.mrb[0].mxu0 %v693
    %v782 = vpop.f32.mrb[0].mxu0
    %v783 = vadd.f32 %v690, %v782
    %v784 = vpop.f32.mrb[0].mxu0
    %785 = vmatprep.mubr.f32.mxu0 0.0
    %786 = vmatmul.mubr.f32.gmra.mrb[0].mxu0 %v696
    %v787 = vpop.f32.mrb[0].mxu0
    %v788 = vadd.f32 %v690, %v787
    %v789 = vpop.f32.mrb[0].mxu0
    %790 = vmatprep.mubr.f32.mxu0 0.0
    %791 = vmatmul.mubr.f32.gmra.mrb[0].mxu0 %v699
    %v792 = vpop.f32.mrb[0].mxu0
    %v793 = vadd.f32 %v690, %v792
    %v794 = vpop.f32.mrb[0].mxu0
    %795 = vmatprep.mubr.f32.mxu0 0.0
    %796 = vmatmul.mubr.f32.gmra.mrb[0].mxu0 %v702
    %v797 = vpop.f32.mrb[0].mxu0
    %v798 = vadd.f32 %v690, %v797
    %v799 = vpop.f32.mrb[0].mxu0
    %800 = vmatprep.mubr.f32.mxu0 0.0
    %801 = vmatmul.mubr.f32.gmra.mrb[0].mxu0 %v705
    %v802 = vpop.f32.mrb[0].mxu0
    %v803 = vadd.f32 %v690, %v802
    %v804 = vpop.f32.mrb[0].mxu0
    %805 = vmatprep.mubr.f32.mxu0 0.0
    %806 = vmatmul.mubr.f32.gmra.mrb[0].mxu0 %v708
    %v807 = vpop.f32.mrb[0].mxu0
    %v808 = vadd.f32 %v690, %v807
    %v809 = vpop.f32.mrb[0].mxu0
    %810 = vmatprep.mubr.f32.mxu0 0.0
    %811 = vmatmul.mubr.f32.gmra.mrb[0].mxu0 %v711
    %v812 = vpop.f32.mrb[0].mxu0
    %v813 = vadd.f32 %v690, %v812
    %v814 = vpop.f32.mrb[0].mxu0
    %815 = vmatprep.mubr.f32.mxu0 0.0
    %816 = vmatmul.mubr.f32.gmra.mrb[0].mxu0 %v714
    %v817 = vpop.f32.mrb[0].mxu0
    %v818 = vadd.f32 %v690, %v817
    %v819 = vpop.f32.mrb[0].mxu0
    %820 = vdwg.mxu0
    %v821 = vmax.f32 %v783, 0.0
    %v822 = vmax.f32 %v788, 0.0
    %v823 = vmax.f32 %v793, 0.0
    %v824 = vmax.f32 %v798, 0.0
    %v825 = vmax.f32 %v803, 0.0
    %v826 = vmax.f32 %v808, 0.0
    %v827 = vmax.f32 %v813, 0.0
    %v828 = vmax.f32 %v818, 0.0
    %v829 = vld [vmem:[%s11] sm:$0xff]
    %v830 = vld [vmem:[%s11 + $0x8] sm:$0xff]
    %v831 = vld [vmem:[%s11 + $0x10] sm:$0xff]
    %v832 = vld [vmem:[%s11 + $0x18] sm:$0xff]
    %v833 = vld [vmem:[%s11 + $0x20] sm:$0xff]
    %v834 = vld [vmem:[%s11 + $0x28] sm:$0xff]
    %v835 = vld [vmem:[%s11 + $0x30] sm:$0xff]
    %v836 = vld [vmem:[%s11 + $0x38] sm:$0xff]
    %v837 = vld [vmem:[%s11 + $0x40] sm:$0xff]
    %v838 = vld [vmem:[%s11 + $0x48] sm:$0xff]
    %v839 = vld [vmem:[%s12] sm:$0x1]
    %v841 = vlaneseq
    %v842 = vshrl.u32 %v841, 7
    %v843 = vsub.s32 0, %v842
    %v844 = vrot.slane %v839, %v843
    %v847 = vsel %vm234, %v821, 0
    %v850 = vsel %vm234, %v822, 0
    %v853 = vsel %vm234, %v823, 0
    %v856 = vsel %vm234, %v824, 0
    %v859 = vsel %vm234, %v825, 0
    %v862 = vsel %vm234, %v826, 0
    %v865 = vsel %vm234, %v827, 0
    %v868 = vsel %vm234, %v828, 0
    %870 = vmatprep.subr.mxu0 0.0
    %871 = vmatpush1.msra.mxu0 %v829
    %872 = vmatprep.subr.mxu0 0.0
    %873 = vmatpush1.msra.mxu0 %v830
    %874 = vmatprep.subr.mxu0 0.0
    %875 = vmatpush1.msra.mxu0 %v831
    %876 = vmatprep.subr.mxu0 0.0
    %877 = vmatpush1.msra.mxu0 %v832
    %878 = vmatprep.subr.mxu0 0.0
    %879 = vmatpush1.msra.mxu0 %v833
    %880 = vmatprep.subr.mxu0 0.0
    %881 = vmatpush1.msra.mxu0 %v834
    %882 = vmatprep.subr.mxu0 0.0
    %883 = vmatpush1.msra.mxu0 %v835
    %884 = vmatprep.subr.mxu0 0.0
    %885 = vmatpush1.msra.mxu0 %v836
    %886 = vmatprep.subr.mxu0 0.0
    %887 = vmatpush1.msra.mxu0 %v837
    %888 = vmatprep.subr.mxu0 0.0
    %889 = vmatpush1.msra.mxu0 %v838
    %890 = vmatprep.subr.mxu0 0.0
    %891 = vmatpush1.msra.mxu0 0.0
    %892 = vmatprep.subr.mxu0 0.0
    %893 = vmatpush1.msra.mxu0 0.0
    %894 = vmatprep.subr.mxu0 0.0
    %895 = vmatpush1.msra.mxu0 0.0
    %896 = vmatprep.subr.mxu0 0.0
    %897 = vmatpush1.msra.mxu0 0.0
    %898 = vmatprep.subr.mxu0 0.0
    %899 = vmatpush1.msra.mxu0 0.0
    %900 = vmatprep.subr.mxu0 0.0
    %901 = vmatpush1.msra.mxu0 0.0
    %902 = vmatprep.subr.mxu0 0.0
    %903 = vmatpush1.msra.mxu0 0.0
    %904 = vmatprep.subr.mxu0 0.0
    %905 = vmatpush1.msra.mxu0 0.0
    %906 = vmatprep.subr.mxu0 0.0
    %907 = vmatpush1.msra.mxu0 0.0
    %908 = vmatprep.subr.mxu0 0.0
    %909 = vmatpush1.msra.mxu0 0.0
    %910 = vmatprep.subr.mxu0 0.0
    %911 = vmatpush1.msra.mxu0 0.0
    %912 = vmatprep.subr.mxu0 0.0
    %913 = vmatpush1.msra.mxu0 0.0
    %914 = vmatprep.subr.mxu0 0.0
    %915 = vmatpush1.msra.mxu0 0.0
    %916 = vmatprep.subr.mxu0 0.0
    %917 = vmatpush1.msra.mxu0 0.0
    %918 = vmatprep.subr.mxu0 0.0
    %919 = vmatpush1.msra.mxu0 0.0
    %920 = vmatprep.subr.mxu0 0.0
    %921 = vmatpush1.msra.mxu0 0.0
    %922 = vmatprep.subr.mxu0 0.0
    %923 = vmatpush1.msra.mxu0 0.0
    %924 = vmatprep.subr.mxu0 0.0
    %925 = vmatpush1.msra.mxu0 0.0
    %926 = vmatprep.subr.mxu0 0.0
    %927 = vmatpush1.msra.mxu0 0.0
    %928 = vmatprep.subr.mxu0 0.0
    %929 = vmatpush1.msra.mxu0 0.0
    %930 = vmatprep.subr.mxu0 0.0
    %931 = vmatpush1.msra.mxu0 0.0
    %932 = vmatprep.subr.mxu0 0.0
    %933 = vmatpush1.msra.mxu0 0.0
    %934 = vmatprep.mubr.f32.mxu0 0.0
    %935 = vmatmul.mubr.f32.gmra.mrb[0].mxu0 %v847
    %v936 = vpop.f32.mrb[0].mxu0
    %v937 = vadd.f32 %v844, %v936
    %v938 = vpop.f32.mrb[0].mxu0
    %939 = vmatprep.mubr.f32.mxu0 0.0
    %940 = vmatmul.mubr.f32.gmra.mrb[0].mxu0 %v850
    %v941 = vpop.f32.mrb[0].mxu0
    %v942 = vadd.f32 %v844, %v941
    %v943 = vpop.f32.mrb[0].mxu0
    %944 = vmatprep.mubr.f32.mxu0 0.0
    %945 = vmatmul.mubr.f32.gmra.mrb[0].mxu0 %v853
    %v946 = vpop.f32.mrb[0].mxu0
    %v947 = vadd.f32 %v844, %v946
    %v948 = vpop.f32.mrb[0].mxu0
    %949 = vmatprep.mubr.f32.mxu0 0.0
    %950 = vmatmul.mubr.f32.gmra.mrb[0].mxu0 %v856
    %v951 = vpop.f32.mrb[0].mxu0
    %v952 = vadd.f32 %v844, %v951
    %v953 = vpop.f32.mrb[0].mxu0
    %954 = vmatprep.mubr.f32.mxu0 0.0
    %955 = vmatmul.mubr.f32.gmra.mrb[0].mxu0 %v859
    %v956 = vpop.f32.mrb[0].mxu0
    %v957 = vadd.f32 %v844, %v956
    %v958 = vpop.f32.mrb[0].mxu0
    %959 = vmatprep.mubr.f32.mxu0 0.0
    %960 = vmatmul.mubr.f32.gmra.mrb[0].mxu0 %v862
    %v961 = vpop.f32.mrb[0].mxu0
    %v962 = vadd.f32 %v844, %v961
    %v963 = vpop.f32.mrb[0].mxu0
    %964 = vmatprep.mubr.f32.mxu0 0.0
    %965 = vmatmul.mubr.f32.gmra.mrb[0].mxu0 %v865
    %v966 = vpop.f32.mrb[0].mxu0
    %v967 = vadd.f32 %v844, %v966
    %v968 = vpop.f32.mrb[0].mxu0
    %969 = vmatprep.mubr.f32.mxu0 0.0
    %970 = vmatmul.mubr.f32.gmra.mrb[0].mxu0 %v868
    %v971 = vpop.f32.mrb[0].mxu0
    %v972 = vadd.f32 %v844, %v971
    %v973 = vpop.f32.mrb[0].mxu0
    %974 = vdwg.mxu0
    %975 = vst [vmem:[#allocation7] sm:$0xff] %v937
    %976 = vst [vmem:[#allocation7 + $0x8] sm:$0xff] %v942
    %977 = vst [vmem:[#allocation7 + $0x10] sm:$0xff] %v947
    %978 = vst [vmem:[#allocation7 + $0x18] sm:$0xff] %v952
    %979 = vst [vmem:[#allocation7 + $0x20] sm:$0xff] %v957
    %980 = vst [vmem:[#allocation7 + $0x28] sm:$0xff] %v962
    %981 = vst [vmem:[#allocation7 + $0x30] sm:$0xff] %v967
    %982 = vst [vmem:[#allocation7 + $0x38] sm:$0xff] %v972
    // Predicated region
    $region62: #{tpu_custom_call.1} parent=1 // pred_check
      _
    $region63: #{tpu_custom_call.1} parent=1 // pred_check_branch
      %984 = sbr.rel (0) target = $region65
    $region64: #{tpu_custom_call.1} parent=1 // pred_region
      %s986 = ssub.s32 1024, 1024
      %987 = vsyncadd [#allocation4], %s986
      %s988 = sshll.u32 [#allocation7], 4
      %s989 = int_to_ptr.vmem [resolvable:$true] %s988
      %994 = dma.vmem_to_hbm [thread:$0]  %s989, 1024, %s13, [#allocation4], 128, 128, 8
    $region65: #{tpu_custom_call.1} parent=1 // pred_fallthru
      _
    // Predicated region
    $region66: #{tpu_custom_call.1} parent=1 // pred_check
      _
    $region67: #{tpu_custom_call.1} parent=1 // pred_check_branch
      %996 = sbr.rel (0) target = $region69
    $region68: #{tpu_custom_call.1} parent=1 // pred_region
      %997 = dma.done [#allocation4], 1024
    $region69: #{tpu_custom_call.1} parent=1 // pred_fallthru
      _
    %998 = vsyncpa [#allocation3], 1
    %999 = vsyncpa [#allocation6], 1
    %1000 = vsyncpa [#allocation4], 1

</llo_original>
